<compile_context>
chip_gen: v7x
topology: tpu7x:2x2x1
jax: 0.10.0
libtpu: 0.0.40
codegen_flags: <defaults>
</compile_context>

<pallas_src>
import math

import jax
import jax.numpy as jnp
from jax import lax
from jax.experimental import pallas as pl
from jax.experimental.pallas import tpu as pltpu


def _round_up(x, m):
    return ((x + m - 1) // m) * m


def _pick_tile_k(d_in_p, max_tile=512):
    """Largest multiple of 128 <= max_tile that divides the padded d_in."""
    t = min(max_tile, d_in_p)
    t -= t % 128
    while d_in_p % t:
        t -= 128
    return t


def _make_kernel(d_hid_true):
    inv_d = 1.0 / float(d_hid_true)
    inv_sqrt2 = 1.0 / math.sqrt(2.0)

    def kernel(x_ref, w1_ref, b1_ref, g_ref, beta_ref, w2_ref, b2_ref,
               o_ref, acc_ref):
        k = pl.program_id(1)

        @pl.when(k == 0)
        def _init():
            acc_ref[...] = jnp.zeros_like(acc_ref)

        # Linear 1: bf16 MXU matmul, f32 accumulation, streamed over d_in.
        acc_ref[...] += jnp.dot(x_ref[...], w1_ref[...],
                                preferred_element_type=jnp.float32)

        @pl.when(k == pl.num_programs(1) - 1)
        def _epilogue():
            h = acc_ref[...] + b1_ref[...]                 # f32 (tile_m, d_hid_p)

            # LayerNorm (eps=1e-5, biased var), single fused reduction pass.
            # Padded hidden columns of h are exactly 0 (zero-padded W1/b1), so
            # sums over the padded width equal sums over the true width; divide
            # by the true hidden dim.
            s = jnp.sum(h, axis=-1, keepdims=True)
            ss = jnp.sum(h * h, axis=-1, keepdims=True)
            mean = s * inv_d
            var = jnp.maximum(ss * inv_d - mean * mean, 0.0)
            hn = (h - mean) * lax.rsqrt(var + 1e-5)
            hn = hn * g_ref[...] + beta_ref[...]           # padded cols -> 0

            # GELU (exact erf form = nn.GELU() default), in f32.
            act = 0.5 * hn * (1.0 + lax.erf(hn * inv_sqrt2))

            # Dropout(0.1): identity in eval mode.
            # TODO(synk): training-mode dropout via pltpu.prng_* if needed.

            # Linear 2: bf16 MXU matmul, f32 accumulation.
            out = jnp.dot(act.astype(jnp.bfloat16), w2_ref[...],
                          preferred_element_type=jnp.float32) + b2_ref[...]
            o_ref[...] = out.astype(o_ref.dtype)

    return kernel


def projection_layer(x, w1, b1, gamma, beta, w2, b2, *,
                     tile_m=256, tile_k=512, out_dtype=jnp.float32):
    """Fused ProjectionLayer forward.

    x:      [N, input_dim]
    w1:     [input_dim, hidden_dim],  b1: [hidden_dim]
    gamma:  [hidden_dim], beta: [hidden_dim]   (LayerNorm affine)
    w2:     [hidden_dim, output_dim], b2: [output_dim]
    returns [N, output_dim] in `out_dtype` (default f32, matching x.float();
    pass jnp.bfloat16 to halve output HBM traffic if downstream accepts it).

    tile_m: row tile (multiple of 8). 256 for v6e/v7x, use 128 on v5e.
    """
    N, d_in = x.shape
    d_hid = w1.shape[1]
    d_out = w2.shape[1]

    # Lane-dense padded dims (multiples of 128).
    d_in_p = _round_up(d_in, 128)
    d_hid_p = _round_up(d_hid, 128)
    d_out_p = _round_up(d_out, 128)

    # Row tile: multiple of 8, bounded so small batches don't over-pad.
    tile_m = max(8, min(int(tile_m), _round_up(N, 8)))
    tile_m = _round_up(tile_m, 8)
    n_pad = _round_up(N, tile_m)

    tile_k = _pick_tile_k(d_in_p, max_tile=int(tile_k))
    grid = (n_pad // tile_m, d_in_p // tile_k)

    # Zero-padded operands; matmul inputs in bf16 (f32 accumulation in-kernel).
    def pad2(a, rows, cols, dt):
        a = a.astype(dt)
        return jnp.pad(a, ((0, rows - a.shape[0]), (0, cols - a.shape[1])))

    x_p = pad2(x, n_pad, d_in_p, jnp.bfloat16)
    w1_p = pad2(w1, d_in_p, d_hid_p, jnp.bfloat16)
    w2_p = pad2(w2, d_hid_p, d_out_p, jnp.bfloat16)
    b1_p = pad2(b1.reshape(1, d_hid), 1, d_hid_p, jnp.float32)
    g_p = pad2(gamma.reshape(1, d_hid), 1, d_hid_p, jnp.float32)
    be_p = pad2(beta.reshape(1, d_hid), 1, d_hid_p, jnp.float32)
    b2_p = pad2(b2.reshape(1, d_out), 1, d_out_p, jnp.float32)

    # Explicit VMEM budget (conservative: assumes double-buffered weights).
    out_bytes = jnp.dtype(out_dtype).itemsize
    est = (2 * tile_m * tile_k * 2             # x tiles (bf16, double-buffered)
           + 2 * tile_k * d_hid_p * 2          # W1 K-slices (bf16, double-buffered)
           + 2 * d_hid_p * d_out_p * 2         # W2 (bf16)
           + 2 * tile_m * d_out_p * out_bytes  # output tiles
           + tile_m * d_hid_p * 4              # f32 accumulator scratch
           + 3 * tile_m * d_hid_p * 4          # live f32 LN/GELU intermediates
           + 16 * (d_hid_p + d_out_p) * 4)     # biases / affine params
    vmem_limit = int(min(64 * 1024 * 1024, max(2 * est, 16 * 1024 * 1024)))

    kernel = _make_kernel(d_hid)

    def run(single_buffer_weights):
        def const_spec(shape):
            # Constant-index params: single-buffer to save VMEM (v7x: 64 MiB).
            if single_buffer_weights:
                return pl.BlockSpec(shape, lambda i, k: (0, 0),
                                    pipeline_mode=pl.Buffered(1))
            return pl.BlockSpec(shape, lambda i, k: (0, 0))

        grid_spec = pltpu.PrefetchScalarGridSpec(
            num_scalar_prefetch=0,
            grid=grid,
            in_specs=[
                pl.BlockSpec((tile_m, tile_k), lambda i, k: (i, k)),   # x
                pl.BlockSpec((tile_k, d_hid_p), lambda i, k: (k, 0)),  # W1 (streamed over K)
                const_spec((1, d_hid_p)),                              # b1
                const_spec((1, d_hid_p)),                              # gamma
                const_spec((1, d_hid_p)),                              # beta
                const_spec((d_hid_p, d_out_p)),                        # W2 (resident)
                const_spec((1, d_out_p)),                              # b2
            ],
            out_specs=pl.BlockSpec((tile_m, d_out_p), lambda i, k: (i, 0)),
            scratch_shapes=[pltpu.VMEM((tile_m, d_hid_p), jnp.float32)],
        )
        return pl.pallas_call(
            kernel,
            out_shape=jax.ShapeDtypeStruct((n_pad, d_out_p), out_dtype),
            grid_spec=grid_spec,
            compiler_params=pltpu.CompilerParams(
                dimension_semantics=("parallel", "arbitrary"),
                vmem_limit_bytes=vmem_limit,
            ),
        )(x_p, w1_p, b1_p, g_p, be_p, w2_p, b2_p)

    try:
        out_p = run(single_buffer_weights=True)
    except Exception:
        # pipeline_mode=pl.Buffered(1) not supported on this jax version:
        # fall back to default (double-buffered) weight specs.
        out_p = run(single_buffer_weights=False)

    return out_p[:N, :d_out]


if __name__ == "__main__":
    # Small deterministic setup consistent with ProjectionLayer(input_dim,
    # output_dim, hidden_dim) — hidden_dim overridden small for a quick test.
    batch = 8
    input_dim = 32
    hidden_dim = 256
    output_dim = 64

    key = jax.random.PRNGKey(0)
    kx, kw1, kb1, kw2, kb2 = jax.random.split(key, 5)

    x = jax.random.normal(kx, (batch, input_dim), dtype=jnp.float32)

    lim1 = 1.0 / math.sqrt(input_dim)
    w1 = jax.random.uniform(kw1, (input_dim, hidden_dim), jnp.float32, -lim1, lim1)
    b1 = jax.random.uniform(kb1, (hidden_dim,), jnp.float32, -lim1, lim1)
    gamma = jnp.ones((hidden_dim,), jnp.float32)
    beta = jnp.zeros((hidden_dim,), jnp.float32)
    lim2 = 1.0 / math.sqrt(hidden_dim)
    w2 = jax.random.uniform(kw2, (hidden_dim, output_dim), jnp.float32, -lim2, lim2)
    b2 = jax.random.uniform(kb2, (output_dim,), jnp.float32, -lim2, lim2)

    out = projection_layer(x, w1, b1, gamma, beta, w2, b2)
    out = jax.block_until_ready(out)

    # Reference A: mirrors the kernel's bf16 matmul inputs (f32 accumulation).
    xb = x.astype(jnp.bfloat16).astype(jnp.float32)
    w1b = w1.astype(jnp.bfloat16).astype(jnp.float32)
    w2b = w2.astype(jnp.bfloat16).astype(jnp.float32)
    h = xb @ w1b + b1
    mu = h.mean(-1, keepdims=True)
    var = ((h - mu) ** 2).mean(-1, keepdims=True)
    hn = (h - mu) / jnp.sqrt(var + 1e-5) * gamma + beta
    act = 0.5 * hn * (1.0 + lax.erf(hn / math.sqrt(2.0)))
    ref_bf16 = act.astype(jnp.bfloat16).astype(jnp.float32) @ w2b + b2

    # Reference B: pure f32 PyTorch-equivalent math (loose tolerance: kernel
    # feeds the MXU in bf16).
    h32 = x @ w1 + b1
    mu32 = h32.mean(-1, keepdims=True)
    var32 = ((h32 - mu32) ** 2).mean(-1, keepdims=True)
    hn32 = (h32 - mu32) / jnp.sqrt(var32 + 1e-5) * gamma + beta
    act32 = 0.5 * hn32 * (1.0 + lax.erf(hn32 / math.sqrt(2.0)))
    ref_f32 = act32 @ w2 + b2

    assert jnp.allclose(out, ref_bf16, atol=5e-3, rtol=5e-3), (
        "mismatch vs bf16-matched reference")
    assert jnp.allclose(out, ref_f32, atol=1e-1, rtol=1e-1), (
        "mismatch vs f32 reference")

    print("KERNEL_OK")
</pallas_src>

<mosaic_0001>
module attributes {stable_mosaic.version = 11 : i64} {
  func.func @kernel(%arg0: i32, %arg1: i32, %arg2: memref<8x128xbf16, #tpu.memory_space<vmem>>, %arg3: memref<128x256xbf16, #tpu.memory_space<vmem>>, %arg4: memref<1x256xf32, #tpu.memory_space<vmem>>, %arg5: memref<1x256xf32, #tpu.memory_space<vmem>>, %arg6: memref<1x256xf32, #tpu.memory_space<vmem>>, %arg7: memref<256x128xbf16, #tpu.memory_space<vmem>>, %arg8: memref<1x128xf32, #tpu.memory_space<vmem>>, %arg9: memref<8x128xf32, #tpu.memory_space<vmem>>, %arg10: memref<8x256xf32, #tpu.memory_space<vmem>>) attributes {dimension_semantics = [#tpu.dimension_semantics<parallel>, #tpu.dimension_semantics<arbitrary>], iteration_bounds = array<i64: 1, 1>, scalar_prefetch = 0 : i64, scratch_operands = 1 : i64, tpu.core_type = #tpu.core_type<tc>, window_params = [{transform_indices = @transform_0, window_bounds = array<i64: 8, 128>}, {transform_indices = @transform_1, window_bounds = array<i64: 128, 256>}, {pipeline_mode = #tpu.pipeline_mode<synchronous>, transform_indices = @transform_2, window_bounds = array<i64: 1, 256>}, {pipeline_mode = #tpu.pipeline_mode<synchronous>, transform_indices = @transform_3, window_bounds = array<i64: 1, 256>}, {pipeline_mode = #tpu.pipeline_mode<synchronous>, transform_indices = @transform_4, window_bounds = array<i64: 1, 256>}, {pipeline_mode = #tpu.pipeline_mode<synchronous>, transform_indices = @transform_5, window_bounds = array<i64: 256, 128>}, {pipeline_mode = #tpu.pipeline_mode<synchronous>, transform_indices = @transform_6, window_bounds = array<i64: 1, 128>}, {transform_indices = @transform_7, window_bounds = array<i64: 8, 128>}]} {
    %c0_i32 = arith.constant 0 : i32
    %0 = arith.cmpi eq, %arg1, %c0_i32 : i32
    %1 = arith.extui %0 : i1 to i32
    %c0_i32_0 = arith.constant 0 : i32
    %2 = arith.cmpi ne, %1, %c0_i32_0 : i32
    scf.if %2 {
      %cst_10 = arith.constant 0.000000e+00 : f32
      %12 = vector.broadcast %cst_10 : f32 to vector<8x256xf32>
      %c0_11 = arith.constant 0 : index
      %c0_12 = arith.constant 0 : index
      %13 = vector.load %arg10[%c0_11, %c0_12] : memref<8x256xf32, #tpu.memory_space<vmem>>, vector<8x256xf32>
      tpu.vector_store %arg10[%c0_11, %c0_12], %12 {strides = array<i32>} : memref<8x256xf32, #tpu.memory_space<vmem>>, vector<8x256xf32>,
    } else {
    }
    %c0 = arith.constant 0 : index
    %c0_1 = arith.constant 0 : index
    %3 = vector.load %arg10[%c0, %c0_1] : memref<8x256xf32, #tpu.memory_space<vmem>>, vector<8x256xf32>
    %c0_2 = arith.constant 0 : index
    %c0_3 = arith.constant 0 : index
    %4 = vector.load %arg2[%c0_2, %c0_3] : memref<8x128xbf16, #tpu.memory_space<vmem>>, vector<8x128xbf16>
    %c0_4 = arith.constant 0 : index
    %c0_5 = arith.constant 0 : index
    %5 = vector.load %arg3[%c0_4, %c0_5] : memref<128x256xbf16, #tpu.memory_space<vmem>>, vector<128x256xbf16>
    %cst = arith.constant dense<0.000000e+00> : vector<8x256xf32>
    %6 = tpu.matmul %4, %5, %cst {dimension_numbers = #tpu.dot_dimension_numbers<[1], [0], [0], [1], [0, 0, 1, 1], [], []>} : vector<8x128xbf16>, vector<128x256xbf16>, vector<8x256xf32> -> vector<8x256xf32>
    %7 = arith.addf %3, %6 : vector<8x256xf32>
    %c0_6 = arith.constant 0 : index
    %c0_7 = arith.constant 0 : index
    %8 = vector.load %arg10[%c0_6, %c0_7] : memref<8x256xf32, #tpu.memory_space<vmem>>, vector<8x256xf32>
    tpu.vector_store %arg10[%c0_6, %c0_7], %7 {strides = array<i32>} : memref<8x256xf32, #tpu.memory_space<vmem>>, vector<8x256xf32>,
    %c0_i32_8 = arith.constant 0 : i32
    %9 = arith.cmpi eq, %arg1, %c0_i32_8 : i32
    %10 = arith.extui %9 : i1 to i32
    %c0_i32_9 = arith.constant 0 : i32
    %11 = arith.cmpi ne, %10, %c0_i32_9 : i32
    scf.if %11 {
      %c0_10 = arith.constant 0 : index
      %c0_11 = arith.constant 0 : index
      %12 = vector.load %arg10[%c0_10, %c0_11] : memref<8x256xf32, #tpu.memory_space<vmem>>, vector<8x256xf32>
      %c0_12 = arith.constant 0 : index
      %c0_13 = arith.constant 0 : index
      %13 = vector.load %arg4[%c0_12, %c0_13] : memref<1x256xf32, #tpu.memory_space<vmem>>, vector<1x256xf32>
      %14 = vector.broadcast %13 : vector<1x256xf32> to vector<8x256xf32>
      %15 = arith.addf %12, %14 : vector<8x256xf32>
      %cst_14 = arith.constant dense<0.000000e+00> : vector<8xf32>
      %16 = vector.multi_reduction <add>, %15, %cst_14 [1] : vector<8x256xf32> to vector<8xf32>
      %17 = vector.shape_cast %16 : vector<8xf32> to vector<8x1xf32>
      %18 = arith.mulf %15, %15 : vector<8x256xf32>
      %cst_15 = arith.constant dense<0.000000e+00> : vector<8xf32>
      %19 = vector.multi_reduction <add>, %18, %cst_15 [1] : vector<8x256xf32> to vector<8xf32>
      %20 = vector.shape_cast %19 : vector<8xf32> to vector<8x1xf32>
      %cst_16 = arith.constant 3.906250e-03 : f32
      %21 = vector.broadcast %cst_16 : f32 to vector<8x1xf32>
      %22 = arith.mulf %17, %21 : vector<8x1xf32>
      %cst_17 = arith.constant 3.906250e-03 : f32
      %23 = vector.broadcast %cst_17 : f32 to vector<8x1xf32>
      %24 = arith.mulf %20, %23 : vector<8x1xf32>
      %25 = arith.mulf %22, %22 : vector<8x1xf32>
      %26 = arith.subf %24, %25 : vector<8x1xf32>
      %cst_18 = arith.constant 0.000000e+00 : f32
      %27 = vector.broadcast %cst_18 : f32 to vector<8x1xf32>
      %28 = arith.maximumf %26, %27 : vector<8x1xf32>
      %29 = vector.broadcast %22 : vector<8x1xf32> to vector<8x256xf32>
      %30 = arith.subf %15, %29 : vector<8x256xf32>
      %cst_19 = arith.constant 9.99999974E-6 : f32
      %31 = vector.broadcast %cst_19 : f32 to vector<8x1xf32>
      %32 = arith.addf %28, %31 : vector<8x1xf32>
      %33 = math.rsqrt %32 : vector<8x1xf32>
      %34 = vector.broadcast %33 : vector<8x1xf32> to vector<8x256xf32>
      %35 = arith.mulf %30, %34 : vector<8x256xf32>
      %c0_20 = arith.constant 0 : index
      %c0_21 = arith.constant 0 : index
      %36 = vector.load %arg5[%c0_20, %c0_21] : memref<1x256xf32, #tpu.memory_space<vmem>>, vector<1x256xf32>
      %37 = vector.broadcast %36 : vector<1x256xf32> to vector<8x256xf32>
      %38 = arith.mulf %35, %37 : vector<8x256xf32>
      %c0_22 = arith.constant 0 : index
      %c0_23 = arith.constant 0 : index
      %39 = vector.load %arg6[%c0_22, %c0_23] : memref<1x256xf32, #tpu.memory_space<vmem>>, vector<1x256xf32>
      %40 = vector.broadcast %39 : vector<1x256xf32> to vector<8x256xf32>
      %41 = arith.addf %38, %40 : vector<8x256xf32>
      %cst_24 = arith.constant 5.000000e-01 : f32
      %42 = vector.broadcast %cst_24 : f32 to vector<8x256xf32>
      %43 = arith.mulf %42, %41 : vector<8x256xf32>
      %cst_25 = arith.constant 0.707106769 : f32
      %44 = vector.broadcast %cst_25 : f32 to vector<8x256xf32>
      %45 = arith.mulf %41, %44 : vector<8x256xf32>
      %46 = math.erf %45 : vector<8x256xf32>
      %cst_26 = arith.constant 1.000000e+00 : f32
      %47 = vector.broadcast %cst_26 : f32 to vector<8x256xf32>
      %48 = arith.addf %47, %46 : vector<8x256xf32>
      %49 = arith.mulf %43, %48 : vector<8x256xf32>
      %50 = arith.truncf %49 : vector<8x256xf32> to vector<8x256xbf16>
      %c0_27 = arith.constant 0 : index
      %c0_28 = arith.constant 0 : index
      %51 = vector.load %arg7[%c0_27, %c0_28] : memref<256x128xbf16, #tpu.memory_space<vmem>>, vector<256x128xbf16>
      %cst_29 = arith.constant dense<0.000000e+00> : vector<8x128xf32>
      %52 = tpu.matmul %50, %51, %cst_29 {dimension_numbers = #tpu.dot_dimension_numbers<[1], [0], [0], [1], [0, 0, 1, 1], [], []>} : vector<8x256xbf16>, vector<256x128xbf16>, vector<8x128xf32> -> vector<8x128xf32>
      %c0_30 = arith.constant 0 : index
      %c0_31 = arith.constant 0 : index
      %53 = vector.load %arg8[%c0_30, %c0_31] : memref<1x128xf32, #tpu.memory_space<vmem>>, vector<1x128xf32>
      %54 = vector.broadcast %53 : vector<1x128xf32> to vector<8x128xf32>
      %55 = arith.addf %52, %54 : vector<8x128xf32>
      %c0_32 = arith.constant 0 : index
      %c0_33 = arith.constant 0 : index
      %56 = vector.load %arg9[%c0_32, %c0_33] : memref<8x128xf32, #tpu.memory_space<vmem>>, vector<8x128xf32>
      tpu.vector_store %arg9[%c0_32, %c0_33], %55 {strides = array<i32>} : memref<8x128xf32, #tpu.memory_space<vmem>>, vector<8x128xf32>,
    } else {
    }
    return
  }
  func.func @transform_0(%arg0: i32, %arg1: i32) -> (i32, i32) {
    %c0_i32 = arith.constant 0 : i32
    return %arg0, %arg1 : i32, i32
  }
  func.func @transform_1(%arg0: i32, %arg1: i32) -> (i32, i32) {
    %c0_i32 = arith.constant 0 : i32
    %c0_i32_0 = arith.constant 0 : i32
    return %arg1, %c0_i32 : i32, i32
  }
  func.func @transform_2(%arg0: i32, %arg1: i32) -> (i32, i32) {
    %c0_i32 = arith.constant 0 : i32
    %c0_i32_0 = arith.constant 0 : i32
    %c0_i32_1 = arith.constant 0 : i32
    return %c0_i32, %c0_i32_0 : i32, i32
  }
  func.func @transform_3(%arg0: i32, %arg1: i32) -> (i32, i32) {
    %c0_i32 = arith.constant 0 : i32
    %c0_i32_0 = arith.constant 0 : i32
    %c0_i32_1 = arith.constant 0 : i32
    return %c0_i32, %c0_i32_0 : i32, i32
  }
  func.func @transform_4(%arg0: i32, %arg1: i32) -> (i32, i32) {
    %c0_i32 = arith.constant 0 : i32
    %c0_i32_0 = arith.constant 0 : i32
    %c0_i32_1 = arith.constant 0 : i32
    return %c0_i32, %c0_i32_0 : i32, i32
  }
  func.func @transform_5(%arg0: i32, %arg1: i32) -> (i32, i32) {
    %c0_i32 = arith.constant 0 : i32
    %c0_i32_0 = arith.constant 0 : i32
    %c0_i32_1 = arith.constant 0 : i32
    return %c0_i32, %c0_i32_0 : i32, i32
  }
  func.func @transform_6(%arg0: i32, %arg1: i32) -> (i32, i32) {
    %c0_i32 = arith.constant 0 : i32
    %c0_i32_0 = arith.constant 0 : i32
    %c0_i32_1 = arith.constant 0 : i32
    return %c0_i32, %c0_i32_0 : i32, i32
  }
  func.func @transform_7(%arg0: i32, %arg1: i32) -> (i32, i32) {
    %c0_i32 = arith.constant 0 : i32
    %c0_i32_0 = arith.constant 0 : i32
    return %arg0, %c0_i32 : i32, i32
  }
}

module attributes {stable_mosaic.version = 11 : i64} {
  func.func @kernel(%arg0: i32, %arg1: i32, %arg2: memref<8x128xbf16, #tpu.memory_space<vmem>>, %arg3: memref<128x256xbf16, #tpu.memory_space<vmem>>, %arg4: memref<1x256xf32, #tpu.memory_space<vmem>>, %arg5: memref<1x256xf32, #tpu.memory_space<vmem>>, %arg6: memref<1x256xf32, #tpu.memory_space<vmem>>, %arg7: memref<256x128xbf16, #tpu.memory_space<vmem>>, %arg8: memref<1x128xf32, #tpu.memory_space<vmem>>, %arg9: memref<8x128xf32, #tpu.memory_space<vmem>>, %arg10: memref<8x256xf32, #tpu.memory_space<vmem>>) attributes {dimension_semantics = [#tpu.dimension_semantics<parallel>, #tpu.dimension_semantics<arbitrary>], iteration_bounds = array<i64: 1, 1>, scalar_prefetch = 0 : i64, scratch_operands = 1 : i64, tpu.core_type = #tpu.core_type<tc>, window_params = [{transform_indices = @transform_0, window_bounds = array<i64: 8, 128>}, {transform_indices = @transform_1, window_bounds = array<i64: 128, 256>}, {pipeline_mode = #tpu.pipeline_mode<synchronous>, transform_indices = @transform_2, window_bounds = array<i64: 1, 256>}, {pipeline_mode = #tpu.pipeline_mode<synchronous>, transform_indices = @transform_3, window_bounds = array<i64: 1, 256>}, {pipeline_mode = #tpu.pipeline_mode<synchronous>, transform_indices = @transform_4, window_bounds = array<i64: 1, 256>}, {pipeline_mode = #tpu.pipeline_mode<synchronous>, transform_indices = @transform_5, window_bounds = array<i64: 256, 128>}, {pipeline_mode = #tpu.pipeline_mode<synchronous>, transform_indices = @transform_6, window_bounds = array<i64: 1, 128>}, {transform_indices = @transform_7, window_bounds = array<i64: 8, 128>}]} {
    %c0_i32 = arith.constant 0 : i32
    %0 = arith.cmpi eq, %arg1, %c0_i32 : i32
    %1 = arith.extui %0 : i1 to i32
    %c0_i32_0 = arith.constant 0 : i32
    %2 = arith.cmpi ne, %1, %c0_i32_0 : i32
    scf.if %2 {
      %cst_10 = arith.constant 0.000000e+00 : f32
      %12 = vector.broadcast %cst_10 : f32 to vector<8x256xf32>
      %c0_11 = arith.constant 0 : index
      %c0_12 = arith.constant 0 : index
      %13 = vector.load %arg10[%c0_11, %c0_12] : memref<8x256xf32, #tpu.memory_space<vmem>>, vector<8x256xf32>
      tpu.vector_store %arg10[%c0_11, %c0_12], %12 {strides = array<i32>} : memref<8x256xf32, #tpu.memory_space<vmem>>, vector<8x256xf32>,
    } else {
    }
    %c0 = arith.constant 0 : index
    %c0_1 = arith.constant 0 : index
    %3 = vector.load %arg10[%c0, %c0_1] : memref<8x256xf32, #tpu.memory_space<vmem>>, vector<8x256xf32>
    %c0_2 = arith.constant 0 : index
    %c0_3 = arith.constant 0 : index
    %4 = vector.load %arg2[%c0_2, %c0_3] : memref<8x128xbf16, #tpu.memory_space<vmem>>, vector<8x128xbf16>
    %c0_4 = arith.constant 0 : index
    %c0_5 = arith.constant 0 : index
    %5 = vector.load %arg3[%c0_4, %c0_5] : memref<128x256xbf16, #tpu.memory_space<vmem>>, vector<128x256xbf16>
    %cst = arith.constant dense<0.000000e+00> : vector<8x256xf32>
    %6 = tpu.matmul %4, %5, %cst {dimension_numbers = #tpu.dot_dimension_numbers<[1], [0], [0], [1], [0, 0, 1, 1], [], []>} : vector<8x128xbf16>, vector<128x256xbf16>, vector<8x256xf32> -> vector<8x256xf32>
    %7 = arith.addf %3, %6 : vector<8x256xf32>
    %c0_6 = arith.constant 0 : index
    %c0_7 = arith.constant 0 : index
    %8 = vector.load %arg10[%c0_6, %c0_7] : memref<8x256xf32, #tpu.memory_space<vmem>>, vector<8x256xf32>
    tpu.vector_store %arg10[%c0_6, %c0_7], %7 {strides = array<i32>} : memref<8x256xf32, #tpu.memory_space<vmem>>, vector<8x256xf32>,
    %c0_i32_8 = arith.constant 0 : i32
    %9 = arith.cmpi eq, %arg1, %c0_i32_8 : i32
    %10 = arith.extui %9 : i1 to i32
    %c0_i32_9 = arith.constant 0 : i32
    %11 = arith.cmpi ne, %10, %c0_i32_9 : i32
    scf.if %11 {
      %c0_10 = arith.constant 0 : index
      %c0_11 = arith.constant 0 : index
      %12 = vector.load %arg10[%c0_10, %c0_11] : memref<8x256xf32, #tpu.memory_space<vmem>>, vector<8x256xf32>
      %c0_12 = arith.constant 0 : index
      %c0_13 = arith.constant 0 : index
      %13 = vector.load %arg4[%c0_12, %c0_13] : memref<1x256xf32, #tpu.memory_space<vmem>>, vector<1x256xf32>
      %14 = vector.broadcast %13 : vector<1x256xf32> to vector<8x256xf32>
      %15 = arith.addf %12, %14 : vector<8x256xf32>
      %cst_14 = arith.constant dense<0.000000e+00> : vector<8xf32>
      %16 = vector.multi_reduction <add>, %15, %cst_14 [1] : vector<8x256xf32> to vector<8xf32>
      %17 = vector.shape_cast %16 : vector<8xf32> to vector<8x1xf32>
      %18 = arith.mulf %15, %15 : vector<8x256xf32>
      %cst_15 = arith.constant dense<0.000000e+00> : vector<8xf32>
      %19 = vector.multi_reduction <add>, %18, %cst_15 [1] : vector<8x256xf32> to vector<8xf32>
      %20 = vector.shape_cast %19 : vector<8xf32> to vector<8x1xf32>
      %cst_16 = arith.constant 3.906250e-03 : f32
      %21 = vector.broadcast %cst_16 : f32 to vector<8x1xf32>
      %22 = arith.mulf %17, %21 : vector<8x1xf32>
      %cst_17 = arith.constant 3.906250e-03 : f32
      %23 = vector.broadcast %cst_17 : f32 to vector<8x1xf32>
      %24 = arith.mulf %20, %23 : vector<8x1xf32>
      %25 = arith.mulf %22, %22 : vector<8x1xf32>
      %26 = arith.subf %24, %25 : vector<8x1xf32>
      %cst_18 = arith.constant 0.000000e+00 : f32
      %27 = vector.broadcast %cst_18 : f32 to vector<8x1xf32>
      %28 = arith.maximumf %26, %27 : vector<8x1xf32>
      %29 = vector.broadcast %22 : vector<8x1xf32> to vector<8x256xf32>
      %30 = arith.subf %15, %29 : vector<8x256xf32>
      %cst_19 = arith.constant 9.99999974E-6 : f32
      %31 = vector.broadcast %cst_19 : f32 to vector<8x1xf32>
      %32 = arith.addf %28, %31 : vector<8x1xf32>
      %33 = math.rsqrt %32 : vector<8x1xf32>
      %34 = vector.broadcast %33 : vector<8x1xf32> to vector<8x256xf32>
      %35 = arith.mulf %30, %34 : vector<8x256xf32>
      %c0_20 = arith.constant 0 : index
      %c0_21 = arith.constant 0 : index
      %36 = vector.load %arg5[%c0_20, %c0_21] : memref<1x256xf32, #tpu.memory_space<vmem>>, vector<1x256xf32>
      %37 = vector.broadcast %36 : vector<1x256xf32> to vector<8x256xf32>
      %38 = arith.mulf %35, %37 : vector<8x256xf32>
      %c0_22 = arith.constant 0 : index
      %c0_23 = arith.constant 0 : index
      %39 = vector.load %arg6[%c0_22, %c0_23] : memref<1x256xf32, #tpu.memory_space<vmem>>, vector<1x256xf32>
      %40 = vector.broadcast %39 : vector<1x256xf32> to vector<8x256xf32>
      %41 = arith.addf %38, %40 : vector<8x256xf32>
      %cst_24 = arith.constant 5.000000e-01 : f32
      %42 = vector.broadcast %cst_24 : f32 to vector<8x256xf32>
      %43 = arith.mulf %42, %41 : vector<8x256xf32>
      %cst_25 = arith.constant 0.707106769 : f32
      %44 = vector.broadcast %cst_25 : f32 to vector<8x256xf32>
      %45 = arith.mulf %41, %44 : vector<8x256xf32>
      %46 = math.erf %45 : vector<8x256xf32>
      %cst_26 = arith.constant 1.000000e+00 : f32
      %47 = vector.broadcast %cst_26 : f32 to vector<8x256xf32>
      %48 = arith.addf %47, %46 : vector<8x256xf32>
      %49 = arith.mulf %43, %48 : vector<8x256xf32>
      %50 = arith.truncf %49 : vector<8x256xf32> to vector<8x256xbf16>
      %c0_27 = arith.constant 0 : index
      %c0_28 = arith.constant 0 : index
      %51 = vector.load %arg7[%c0_27, %c0_28] : memref<256x128xbf16, #tpu.memory_space<vmem>>, vector<256x128xbf16>
      %cst_29 = arith.constant dense<0.000000e+00> : vector<8x128xf32>
      %52 = tpu.matmul %50, %51, %cst_29 {dimension_numbers = #tpu.dot_dimension_numbers<[1], [0], [0], [1], [0, 0, 1, 1], [], []>} : vector<8x256xbf16>, vector<256x128xbf16>, vector<8x128xf32> -> vector<8x128xf32>
      %c0_30 = arith.constant 0 : index
      %c0_31 = arith.constant 0 : index
      %53 = vector.load %arg8[%c0_30, %c0_31] : memref<1x128xf32, #tpu.memory_space<vmem>>, vector<1x128xf32>
      %54 = vector.broadcast %53 : vector<1x128xf32> to vector<8x128xf32>
      %55 = arith.addf %52, %54 : vector<8x128xf32>
      %c0_32 = arith.constant 0 : index
      %c0_33 = arith.constant 0 : index
      %56 = vector.load %arg9[%c0_32, %c0_33] : memref<8x128xf32, #tpu.memory_space<vmem>>, vector<8x128xf32>
      tpu.vector_store %arg9[%c0_32, %c0_33], %55 {strides = array<i32>} : memref<8x128xf32, #tpu.memory_space<vmem>>, vector<8x128xf32>,
    } else {
    }
    return
  }
  func.func @transform_0(%arg0: i32, %arg1: i32) -> (i32, i32) {
    %c0_i32 = arith.constant 0 : i32
    return %arg0, %arg1 : i32, i32
  }
  func.func @transform_1(%arg0: i32, %arg1: i32) -> (i32, i32) {
    %c0_i32 = arith.constant 0 : i32
    %c0_i32_0 = arith.constant 0 : i32
    return %arg1, %c0_i32 : i32, i32
  }
  func.func @transform_2(%arg0: i32, %arg1: i32) -> (i32, i32) {
    %c0_i32 = arith.constant 0 : i32
    %c0_i32_0 = arith.constant 0 : i32
    %c0_i32_1 = arith.constant 0 : i32
    return %c0_i32, %c0_i32_0 : i32, i32
  }
  func.func @transform_3(%arg0: i32, %arg1: i32) -> (i32, i32) {
    %c0_i32 = arith.constant 0 : i32
    %c0_i32_0 = arith.constant 0 : i32
    %c0_i32_1 = arith.constant 0 : i32
    return %c0_i32, %c0_i32_0 : i32, i32
  }
  func.func @transform_4(%arg0: i32, %arg1: i32) -> (i32, i32) {
    %c0_i32 = arith.constant 0 : i32
    %c0_i32_0 = arith.constant 0 : i32
    %c0_i32_1 = arith.constant 0 : i32
    return %c0_i32, %c0_i32_0 : i32, i32
  }
  func.func @transform_5(%arg0: i32, %arg1: i32) -> (i32, i32) {
    %c0_i32 = arith.constant 0 : i32
    %c0_i32_0 = arith.constant 0 : i32
    %c0_i32_1 = arith.constant 0 : i32
    return %c0_i32, %c0_i32_0 : i32, i32
  }
  func.func @transform_6(%arg0: i32, %arg1: i32) -> (i32, i32) {
    %c0_i32 = arith.constant 0 : i32
    %c0_i32_0 = arith.constant 0 : i32
    %c0_i32_1 = arith.constant 0 : i32
    return %c0_i32, %c0_i32_0 : i32, i32
  }
  func.func @transform_7(%arg0: i32, %arg1: i32) -> (i32, i32) {
    %c0_i32 = arith.constant 0 : i32
    %c0_i32_0 = arith.constant 0 : i32
    return %arg0, %c0_i32 : i32, i32
  }
}

</mosaic_0001>

<llo_original>
// kernel: tpu_custom_call.1
$region0: #{tpu_custom_call.1}
  #allocation0 [shape = 'u32[]', space=smem, size = 0x4, offset = 0x4, fixed_abs, tag = 'smem constant byte address 0x4 - core index']
  #allocation1 [shape = 'u32[144,128]{1,0:T(1,128)}', space=vmem, size = 0x12000, scoped, tag = 'internal scratch']
  #allocation2 [shape = 'f32[8,256]{1,0:T(8,128)}', space=vmem, size = 0x2000, scoped, tag = 'scratch operand']
  %s0 = inlined_call_operand.hbm [shape: bf16[8,128], index: 0, kind: input, shape index: {}]
  %s1 = inlined_call_operand.hbm [shape: bf16[128,256], index: 1, kind: input, shape index: {}]
  %s2 = inlined_call_operand.vmem [shape: f32[1,256], index: 2, kind: input, shape index: {}]
  %s3 = inlined_call_operand.vmem [shape: f32[1,256], index: 3, kind: input, shape index: {}]
  %s4 = inlined_call_operand.vmem [shape: f32[1,256], index: 4, kind: input, shape index: {}]
  %s5 = inlined_call_operand.hbm [shape: bf16[256,128], index: 5, kind: input, shape index: {}]
  %s6 = inlined_call_operand.vmem [shape: f32[1,128], index: 6, kind: input, shape index: {}]
  %s7 = inlined_call_operand.hbm [shape: f32[8,128], index: 7, kind: output, shape index: {}]
  %s8 = sld [smem:[#allocation0]]
  $region58: #{tpu_custom_call.1} parent=0
    _
  %s10 = ssub.s32 1, %s8
  %s11 = scalar_select 0, %s10, %s8
  $region1: #{tpu_custom_call.1} parent=0
    #allocation3 [shape = 'u8[2048]{0}', space=vmem, size = 0x800, scoped, tag = 'input window, operand 0, single buffered']
    #allocation4 [shape = 's32[1]{0}', space=sflag, size = 0x4, scoped, tag = 'scoped memory for tpu_custom_call.1']
    #allocation5 [shape = 's32[1]{0}', space=sflag, size = 0x4, scoped, tag = 'scoped memory for tpu_custom_call.1']
    #allocation6 [shape = 'u8[65536]{0}', space=vmem, size = 0x10000, scoped, tag = 'input window, operand 1, single buffered']
    #allocation7 [shape = 's32[1]{0}', space=sflag, size = 0x4, scoped, tag = 'scoped memory for tpu_custom_call.1']
    #allocation8 [shape = 'u8[65536]{0}', space=vmem, size = 0x10000, scoped, tag = 'input window, operand 5, single buffered']
    #allocation9 [shape = 'u8[4096]{0}', space=vmem, size = 0x1000, scoped, tag = 'output window, operand 0, single buffered']
    %12 = vsyncpa [#allocation4], 0
    %13 = vsyncpa [#allocation7], 0
    %14 = vsyncpa [#allocation5], 0
    // Predicated region
    $region2: #{tpu_custom_call.1} parent=1 // pred_check
      _
    $region3: #{tpu_custom_call.1} parent=1 // pred_check_branch
      %16 = sbr.rel (0) target = $region5
    $region4: #{tpu_custom_call.1} parent=1 // pred_region
      %s18 = ssub.s32 64, 64
      %19 = vsyncadd [#allocation4], %s18
      %s21 = sshll.u32 [#allocation3], 4
      %s22 = int_to_ptr.vmem [resolvable:$true] %s21
      %24 = dma.hbm_to_vmem [thread:$0]  %s0, 64, %s22, [#allocation4]
    $region5: #{tpu_custom_call.1} parent=1 // pred_fallthru
      _
    // Predicated region
    $region6: #{tpu_custom_call.1} parent=1 // pred_check
      _
    $region7: #{tpu_custom_call.1} parent=1 // pred_check_branch
      %26 = sbr.rel (0) target = $region9
    $region8: #{tpu_custom_call.1} parent=1 // pred_region
      %s28 = ssub.s32 2048, 2048
      %29 = vsyncadd [#allocation7], %s28
      %s30 = sshll.u32 [#allocation6], 4
      %s31 = int_to_ptr.vmem [resolvable:$true] %s30
      %36 = dma.hbm_to_vmem [thread:$0]  %s1, 2048, %s31, [#allocation7], 128, 128, 8
    $region9: #{tpu_custom_call.1} parent=1 // pred_fallthru
      _
    // Predicated region
    $region10: #{tpu_custom_call.1} parent=1 // pred_check
      _
    $region11: #{tpu_custom_call.1} parent=1 // pred_check_branch
      %38 = sbr.rel (0) target = $region13
    $region12: #{tpu_custom_call.1} parent=1 // pred_region
      _
    $region13: #{tpu_custom_call.1} parent=1 // pred_fallthru
      _
    // Predicated region
    $region14: #{tpu_custom_call.1} parent=1 // pred_check
      _
    $region15: #{tpu_custom_call.1} parent=1 // pred_check_branch
      %40 = sbr.rel (0) target = $region17
    $region16: #{tpu_custom_call.1} parent=1 // pred_region
      _
    $region17: #{tpu_custom_call.1} parent=1 // pred_fallthru
      _
    // Predicated region
    $region18: #{tpu_custom_call.1} parent=1 // pred_check
      _
    $region19: #{tpu_custom_call.1} parent=1 // pred_check_branch
      %42 = sbr.rel (0) target = $region21
    $region20: #{tpu_custom_call.1} parent=1 // pred_region
      _
    $region21: #{tpu_custom_call.1} parent=1 // pred_fallthru
      _
    // Predicated region
    $region22: #{tpu_custom_call.1} parent=1 // pred_check
      _
    $region23: #{tpu_custom_call.1} parent=1 // pred_check_branch
      %44 = sbr.rel (0) target = $region25
    $region24: #{tpu_custom_call.1} parent=1 // pred_region
      %s46 = ssub.s32 2048, 2048
      %47 = vsyncadd [#allocation7], %s46
      %s48 = sshll.u32 [#allocation8], 4
      %s49 = int_to_ptr.vmem [resolvable:$true] %s48
      %54 = dma.hbm_to_vmem [thread:$0]  %s5, 2048, %s49, [#allocation7], 64, 64, 4
    $region25: #{tpu_custom_call.1} parent=1 // pred_fallthru
      _
    // Predicated region
    $region26: #{tpu_custom_call.1} parent=1 // pred_check
      _
    $region27: #{tpu_custom_call.1} parent=1 // pred_check_branch
      %56 = sbr.rel (0) target = $region29
    $region28: #{tpu_custom_call.1} parent=1 // pred_region
      _
    $region29: #{tpu_custom_call.1} parent=1 // pred_fallthru
      _
    // Predicated region
    $region30: #{tpu_custom_call.1} parent=1 // pred_check
      _
    $region31: #{tpu_custom_call.1} parent=1 // pred_check_branch
      %58 = sbr.rel (0) target = $region33
    $region32: #{tpu_custom_call.1} parent=1 // pred_region
      %59 = dma.done [#allocation4], 64
    $region33: #{tpu_custom_call.1} parent=1 // pred_fallthru
      _
    // Predicated region
    $region34: #{tpu_custom_call.1} parent=1 // pred_check
      _
    $region35: #{tpu_custom_call.1} parent=1 // pred_check_branch
      %61 = sbr.rel (0) target = $region37
    $region36: #{tpu_custom_call.1} parent=1 // pred_region
      %62 = dma.done [#allocation7], 2048
    $region37: #{tpu_custom_call.1} parent=1 // pred_fallthru
      _
    // Predicated region
    $region38: #{tpu_custom_call.1} parent=1 // pred_check
      _
    $region39: #{tpu_custom_call.1} parent=1 // pred_check_branch
      %64 = sbr.rel (0) target = $region41
    $region40: #{tpu_custom_call.1} parent=1 // pred_region
      %65 = dma.done [#allocation7], 2048
    $region41: #{tpu_custom_call.1} parent=1 // pred_fallthru
      _
    %p67 = scmp.eq.s32.totalorder 0, 0
    // Predicated region
    $region42: #{tpu_custom_call.1} parent=1 // pred_check
      %p68 = pneg %p67
    $region43: #{tpu_custom_call.1} parent=1 // pred_check_branch
      %70 = sbr.rel (%p68) target = $region45
    $region44: #{tpu_custom_call.1} parent=1 // pred_region
      %71 = vst [vmem:[#allocation2] sm:$0xff] 0.0
      %72 = vst [vmem:[#allocation2 + $0x8] sm:$0xff] 0.0
    $region45: #{tpu_custom_call.1} parent=1 // pred_fallthru
      _
    %v73 = vld [vmem:[#allocation2] sm:$0xff]
    %v74 = vld [vmem:[#allocation2 + $0x8] sm:$0xff]
    %v75 = vld [vmem:[#allocation3] sm:$0xf]
    %v76 = vld [vmem:[#allocation6] sm:$0xff]
    %v77 = vld [vmem:[#allocation6 + $0x8] sm:$0xff]
    %v78 = vld [vmem:[#allocation6 + $0x10] sm:$0xff]
    %v79 = vld [vmem:[#allocation6 + $0x18] sm:$0xff]
    %v80 = vld [vmem:[#allocation6 + $0x20] sm:$0xff]
    %v81 = vld [vmem:[#allocation6 + $0x28] sm:$0xff]
    %v82 = vld [vmem:[#allocation6 + $0x30] sm:$0xff]
    %v83 = vld [vmem:[#allocation6 + $0x38] sm:$0xff]
    %v84 = vld [vmem:[#allocation6 + $0x40] sm:$0xff]
    %v85 = vld [vmem:[#allocation6 + $0x48] sm:$0xff]
    %v86 = vld [vmem:[#allocation6 + $0x50] sm:$0xff]
    %v87 = vld [vmem:[#allocation6 + $0x58] sm:$0xff]
    %v88 = vld [vmem:[#allocation6 + $0x60] sm:$0xff]
    %v89 = vld [vmem:[#allocation6 + $0x68] sm:$0xff]
    %v90 = vld [vmem:[#allocation6 + $0x70] sm:$0xff]
    %v91 = vld [vmem:[#allocation6 + $0x78] sm:$0xff]
    %v108 = vunpack.c.l.b16 %v76
    %v109 = vunpack.c.h.b16 %v76
    %v110 = vunpack.c.l.b16 %v77
    %v111 = vunpack.c.h.b16 %v77
    %v112 = vunpack.c.l.b16 %v78
    %v113 = vunpack.c.h.b16 %v78
    %v114 = vunpack.c.l.b16 %v79
    %v115 = vunpack.c.h.b16 %v79
    %v116 = vunpack.c.l.b16 %v80
    %v117 = vunpack.c.h.b16 %v80
    %v118 = vunpack.c.l.b16 %v81
    %v119 = vunpack.c.h.b16 %v81
    %v120 = vunpack.c.l.b16 %v82
    %v121 = vunpack.c.h.b16 %v82
    %v122 = vunpack.c.l.b16 %v83
    %v123 = vunpack.c.h.b16 %v83
    %v124 = vunpack.c.l.b16 %v84
    %v125 = vunpack.c.h.b16 %v84
    %v126 = vunpack.c.l.b16 %v85
    %v127 = vunpack.c.h.b16 %v85
    %v128 = vunpack.c.l.b16 %v86
    %v129 = vunpack.c.h.b16 %v86
    %v130 = vunpack.c.l.b16 %v87
    %v131 = vunpack.c.h.b16 %v87
    %v132 = vunpack.c.l.b16 %v88
    %v133 = vunpack.c.h.b16 %v88
    %v134 = vunpack.c.l.b16 %v89
    %v135 = vunpack.c.h.b16 %v89
    %v136 = vunpack.c.l.b16 %v90
    %v137 = vunpack.c.h.b16 %v90
    %v138 = vunpack.c.l.b16 %v91
    %v139 = vunpack.c.h.b16 %v91
    %v140 = vpack.c.b16 %v110, %v108
    %v141 = vpack.c.b16 %v111, %v109
    %v142 = vpack.c.b16 %v114, %v112
    %v143 = vpack.c.b16 %v115, %v113
    %v144 = vpack.c.b16 %v118, %v116
    %v145 = vpack.c.b16 %v119, %v117
    %v146 = vpack.c.b16 %v122, %v120
    %v147 = vpack.c.b16 %v123, %v121
    %v148 = vpack.c.b16 %v126, %v124
    %v149 = vpack.c.b16 %v127, %v125
    %v150 = vpack.c.b16 %v130, %v128
    %v151 = vpack.c.b16 %v131, %v129
    %v152 = vpack.c.b16 %v134, %v132
    %v153 = vpack.c.b16 %v135, %v133
    %v154 = vpack.c.b16 %v138, %v136
    %v155 = vpack.c.b16 %v139, %v137
    %172 = vmatprep.subr.bf16.mxu0 %v141
    %173 = vmatpush1.bf16.msra.mxu0 %v140
    %174 = vmatprep.subr.bf16.mxu0 %v143
    %175 = vmatpush1.bf16.msra.mxu0 %v142
    %176 = vmatprep.subr.bf16.mxu0 %v145
    %177 = vmatpush1.bf16.msra.mxu0 %v144
    %178 = vmatprep.subr.bf16.mxu0 %v147
    %179 = vmatpush1.bf16.msra.mxu0 %v146
    %180 = vmatprep.subr.bf16.mxu0 %v149
    %181 = vmatpush1.bf16.msra.mxu0 %v148
    %182 = vmatprep.subr.bf16.mxu0 %v151
    %183 = vmatpush1.bf16.msra.mxu0 %v150
    %184 = vmatprep.subr.bf16.mxu0 %v153
    %185 = vmatpush1.bf16.msra.mxu0 %v152
    %186 = vmatprep.subr.bf16.mxu0 %v155
    %187 = vmatpush1.bf16.msra.mxu0 %v154
    %188 = vmatprep.subr.bf16.mxu0 0
    %189 = vmatpush1.bf16.msra.mxu0 0
    %190 = vmatprep.subr.bf16.mxu0 0
    %191 = vmatpush1.bf16.msra.mxu0 0
    %192 = vmatprep.subr.bf16.mxu0 0
    %193 = vmatpush1.bf16.msra.mxu0 0
    %194 = vmatprep.subr.bf16.mxu0 0
    %195 = vmatpush1.bf16.msra.mxu0 0
    %196 = vmatprep.subr.bf16.mxu0 0
    %197 = vmatpush1.bf16.msra.mxu0 0
    %198 = vmatprep.subr.bf16.mxu0 0
    %199 = vmatpush1.bf16.msra.mxu0 0
    %200 = vmatprep.subr.bf16.mxu0 0
    %201 = vmatpush1.bf16.msra.mxu0 0
    %202 = vmatprep.subr.bf16.mxu0 0
    %203 = vmatpush1.bf16.msra.mxu0 0
    %204 = vmatprep.mubr.bf16.mxu0 0
    %205 = vmatmul.mubr.bf16.gmra.mrb[0].mxu0 %v75
    %v206 = vpop.f32.mrb[0].mxu0
    %v207 = vadd.f32 0.0, %v206
    %v208 = vpop.f32.mrb[0].mxu0
    %v209 = vadd.f32 0.0, %v208
    %v210 = vpop.f32.mrb[0].mxu0
    %v211 = vpop.f32.mrb[0].mxu0
    %212 = vdwg.mxu0
    %v213 = vadd.f32 %v73, %v207
    %v214 = vadd.f32 %v74, %v209
    %215 = vst [vmem:[#allocation2] sm:$0xff] %v213
    %216 = vst [vmem:[#allocation2 + $0x8] sm:$0xff] %v214
    // Predicated region
    $region46: #{tpu_custom_call.1} parent=1 // pred_check
      %p217 = pneg %p67
    $region47: #{tpu_custom_call.1} parent=1 // pred_check_branch
      %219 = sbr.rel (%p217) target = $region49
    $region48: #{tpu_custom_call.1} parent=1 // pred_region
      %v220 = vld [vmem:[#allocation2] sm:$0xff]
      %v221 = vld [vmem:[#allocation2 + $0x8] sm:$0xff]
      %v222 = vld [vmem:[%s2] sm:$0x3]
      %v224 = vlaneseq
      %v225 = vshrl.u32 %v224, 7
      %v226 = vsub.s32 0, %v225
      %v227 = vrot.slane %v222, %v226
      %v228 = vlaneseq
      %v229 = vshrl.u32 %v228, 7
      %v230 = vsub.s32 1, %v229
      %v231 = vrot.slane %v222, %v230
      %v234 = vadd.f32 %v220, %v227
      %v235 = vadd.f32 %v221, %v231
      %v236 = vadd.f32 %v234, %v235
      %237 = vadd.xlane.f32.xlu0 %v236
      %v238 = vpop.xlane.xlu0 %237
      %v239 = vmul.f32 %v234, %v234
      %v240 = vmul.f32 %v235, %v235
      %v241 = vadd.f32 %v239, %v240
      %242 = vadd.xlane.f32.xlu0 %v241
      %v243 = vpop.xlane.xlu0 %242
      %v244 = vmul.f32 %v238, 0.00390625
      %v245 = vmul.f32 %v243, 0.00390625
      %v246 = vmul.f32 %v244, %v244
      %v247 = vsub.f32 %v245, %v246
      %v248 = vmax.f32 %v247, 0.0
      %v249 = vsub.f32 %v234, %v244
      %v250 = vsub.f32 %v235, %v244
      %v251 = vadd.f32 %v248, 1e-05
      %v252 = vrsqrt.pop %v251
      %v253 = vmul.f32 %v249, %v252
      %v254 = vmul.f32 %v250, %v252
      %v255 = vld [vmem:[%s3] sm:$0x3]
      %v257 = vlaneseq
      %v258 = vshrl.u32 %v257, 7
      %v259 = vsub.s32 0, %v258
      %v260 = vrot.slane %v255, %v259
      %v261 = vlaneseq
      %v262 = vshrl.u32 %v261, 7
      %v263 = vsub.s32 1, %v262
      %v264 = vrot.slane %v255, %v263
      %v267 = vmul.f32 %v253, %v260
      %v268 = vmul.f32 %v254, %v264
      %v269 = vld [vmem:[%s4] sm:$0x3]
      %v271 = vlaneseq
      %v272 = vshrl.u32 %v271, 7
      %v273 = vsub.s32 0, %v272
      %v274 = vrot.slane %v269, %v273
      %v275 = vlaneseq
      %v276 = vshrl.u32 %v275, 7
      %v277 = vsub.s32 1, %v276
      %v278 = vrot.slane %v269, %v277
      %v281 = vadd.f32 %v267, %v274
      %v282 = vadd.f32 %v268, %v278
      %v283 = vmul.f32 %v281, 0.5
      %v284 = vmul.f32 %v282, 0.5
      %v285 = vmul.f32 %v281, 0.70710677
      %v286 = vmul.f32 %v282, 0.70710677
      %v287 = verf.f32.pop %v285
      %v288 = verf.f32.pop %v286
      %v289 = vadd.f32 %v287, 1.0
      %v290 = vadd.f32 %v288, 1.0
      %v291 = vmul.f32 %v283, %v289
      %v292 = vmul.f32 %v284, %v290
      %v293 = vpack.c.bf16 %v291, %v291
      %v294 = vpack.c.bf16 %v292, %v292
      %v295 = vld [vmem:[#allocation8] sm:$0xf]
      %v296 = vld [vmem:[#allocation8 + $0x4] sm:$0xf]
      %v297 = vld [vmem:[#allocation8 + $0x8] sm:$0xf]
      %v298 = vld [vmem:[#allocation8 + $0xc] sm:$0xf]
      %v299 = vld [vmem:[#allocation8 + $0x10] sm:$0xf]
      %v300 = vld [vmem:[#allocation8 + $0x14] sm:$0xf]
      %v301 = vld [vmem:[#allocation8 + $0x18] sm:$0xf]
      %v302 = vld [vmem:[#allocation8 + $0x1c] sm:$0xf]
      %v303 = vld [vmem:[#allocation8 + $0x20] sm:$0xf]
      %v304 = vld [vmem:[#allocation8 + $0x24] sm:$0xf]
      %v305 = vld [vmem:[#allocation8 + $0x28] sm:$0xf]
      %v306 = vld [vmem:[#allocation8 + $0x2c] sm:$0xf]
      %v307 = vld [vmem:[#allocation8 + $0x30] sm:$0xf]
      %v308 = vld [vmem:[#allocation8 + $0x34] sm:$0xf]
      %v309 = vld [vmem:[#allocation8 + $0x38] sm:$0xf]
      %v310 = vld [vmem:[#allocation8 + $0x3c] sm:$0xf]
      %v311 = vld [vmem:[#allocation8 + $0x40] sm:$0xf]
      %v312 = vld [vmem:[#allocation8 + $0x44] sm:$0xf]
      %v313 = vld [vmem:[#allocation8 + $0x48] sm:$0xf]
      %v314 = vld [vmem:[#allocation8 + $0x4c] sm:$0xf]
      %v315 = vld [vmem:[#allocation8 + $0x50] sm:$0xf]
      %v316 = vld [vmem:[#allocation8 + $0x54] sm:$0xf]
      %v317 = vld [vmem:[#allocation8 + $0x58] sm:$0xf]
      %v318 = vld [vmem:[#allocation8 + $0x5c] sm:$0xf]
      %v319 = vld [vmem:[#allocation8 + $0x60] sm:$0xf]
      %v320 = vld [vmem:[#allocation8 + $0x64] sm:$0xf]
      %v321 = vld [vmem:[#allocation8 + $0x68] sm:$0xf]
      %v322 = vld [vmem:[#allocation8 + $0x6c] sm:$0xf]
      %v323 = vld [vmem:[#allocation8 + $0x70] sm:$0xf]
      %v324 = vld [vmem:[#allocation8 + $0x74] sm:$0xf]
      %v325 = vld [vmem:[#allocation8 + $0x78] sm:$0xf]
      %v326 = vld [vmem:[#allocation8 + $0x7c] sm:$0xf]
      %v327 = vld [vmem:[%s6] sm:$0x1]
      %v329 = vlaneseq
      %v330 = vshrl.u32 %v329, 7
      %v331 = vsub.s32 0, %v330
      %v332 = vrot.slane %v327, %v331
      %v366 = vunpack.c.l.b16 %v295
      %v367 = vunpack.c.l.b16 %v296
      %v368 = vunpack.c.l.b16 %v297
      %v369 = vunpack.c.l.b16 %v298
      %v370 = vunpack.c.l.b16 %v299
      %v371 = vunpack.c.l.b16 %v300
      %v372 = vunpack.c.l.b16 %v301
      %v373 = vunpack.c.l.b16 %v302
      %v374 = vunpack.c.l.b16 %v303
      %v375 = vunpack.c.l.b16 %v304
      %v376 = vunpack.c.l.b16 %v305
      %v377 = vunpack.c.l.b16 %v306
      %v378 = vunpack.c.l.b16 %v307
      %v379 = vunpack.c.l.b16 %v308
      %v380 = vunpack.c.l.b16 %v309
      %v381 = vunpack.c.l.b16 %v310
      %v382 = vunpack.c.l.b16 %v311
      %v383 = vunpack.c.l.b16 %v312
      %v384 = vunpack.c.l.b16 %v313
      %v385 = vunpack.c.l.b16 %v314
      %v386 = vunpack.c.l.b16 %v315
      %v387 = vunpack.c.l.b16 %v316
      %v388 = vunpack.c.l.b16 %v317
      %v389 = vunpack.c.l.b16 %v318
      %v390 = vunpack.c.l.b16 %v319
      %v391 = vunpack.c.l.b16 %v320
      %v392 = vunpack.c.l.b16 %v321
      %v393 = vunpack.c.l.b16 %v322
      %v394 = vunpack.c.l.b16 %v323
      %v395 = vunpack.c.l.b16 %v324
      %v396 = vunpack.c.l.b16 %v325
      %v397 = vunpack.c.l.b16 %v326
      %v398 = vpack.c.b16 %v367, %v366
      %v399 = vpack.c.b16 %v369, %v368
      %v400 = vpack.c.b16 %v371, %v370
      %v401 = vpack.c.b16 %v373, %v372
      %v402 = vpack.c.b16 %v375, %v374
      %v403 = vpack.c.b16 %v377, %v376
      %v404 = vpack.c.b16 %v379, %v378
      %v405 = vpack.c.b16 %v381, %v380
      %v406 = vpack.c.b16 %v383, %v382
      %v407 = vpack.c.b16 %v385, %v384
      %v408 = vpack.c.b16 %v387, %v386
      %v409 = vpack.c.b16 %v389, %v388
      %v410 = vpack.c.b16 %v391, %v390
      %v411 = vpack.c.b16 %v393, %v392
      %v412 = vpack.c.b16 %v395, %v394
      %v413 = vpack.c.b16 %v397, %v396
      %430 = vmatprep.subr.bf16.mxu0 0
      %431 = vmatpush1.bf16.msra.mxu0 %v398
      %432 = vmatprep.subr.bf16.mxu0 0
      %433 = vmatpush1.bf16.msra.mxu0 %v399
      %434 = vmatprep.subr.bf16.mxu0 0
      %435 = vmatpush1.bf16.msra.mxu0 %v400
      %436 = vmatprep.subr.bf16.mxu0 0
      %437 = vmatpush1.bf16.msra.mxu0 %v401
      %438 = vmatprep.subr.bf16.mxu0 0
      %439 = vmatpush1.bf16.msra.mxu0 %v402
      %440 = vmatprep.subr.bf16.mxu0 0
      %441 = vmatpush1.bf16.msra.mxu0 %v403
      %442 = vmatprep.subr.bf16.mxu0 0
      %443 = vmatpush1.bf16.msra.mxu0 %v404
      %444 = vmatprep.subr.bf16.mxu0 0
      %445 = vmatpush1.bf16.msra.mxu0 %v405
      %446 = vmatprep.subr.bf16.mxu0 0
      %447 = vmatpush1.bf16.msra.mxu0 %v406
      %448 = vmatprep.subr.bf16.mxu0 0
      %449 = vmatpush1.bf16.msra.mxu0 %v407
      %450 = vmatprep.subr.bf16.mxu0 0
      %451 = vmatpush1.bf16.msra.mxu0 %v408
      %452 = vmatprep.subr.bf16.mxu0 0
      %453 = vmatpush1.bf16.msra.mxu0 %v409
      %454 = vmatprep.subr.bf16.mxu0 0
      %455 = vmatpush1.bf16.msra.mxu0 %v410
      %456 = vmatprep.subr.bf16.mxu0 0
      %457 = vmatpush1.bf16.msra.mxu0 %v411
      %458 = vmatprep.subr.bf16.mxu0 0
      %459 = vmatpush1.bf16.msra.mxu0 %v412
      %460 = vmatprep.subr.bf16.mxu0 0
      %461 = vmatpush1.bf16.msra.mxu0 %v413
      %462 = vmatprep.mubr.bf16.mxu0 %v294
      %463 = vmatmul.mubr.bf16.gmra.mrb[0].mxu0 %v293
      %v464 = vpop.f32.mrb[0].mxu0
      %v465 = vadd.f32 %v332, %v464
      %v466 = vpop.f32.mrb[0].mxu0
      %v467 = vpop.f32.mrb[0].mxu0
      %v468 = vpop.f32.mrb[0].mxu0
      %469 = vdwg.mxu0
      %470 = vst [vmem:[#allocation9] sm:$0xff] %v465
    $region49: #{tpu_custom_call.1} parent=1 // pred_fallthru
      _
    // Predicated region
    $region50: #{tpu_custom_call.1} parent=1 // pred_check
      _
    $region51: #{tpu_custom_call.1} parent=1 // pred_check_branch
      %472 = sbr.rel (0) target = $region53
    $region52: #{tpu_custom_call.1} parent=1 // pred_region
      %s474 = ssub.s32 128, 128
      %475 = vsyncadd [#allocation5], %s474
      %s477 = sshll.u32 [#allocation9], 4
      %s478 = int_to_ptr.vmem [resolvable:$true] %s477
      %480 = dma.vmem_to_hbm [thread:$0]  %s478, 128, %s7, [#allocation5]
    $region53: #{tpu_custom_call.1} parent=1 // pred_fallthru
      _
    // Predicated region
    $region54: #{tpu_custom_call.1} parent=1 // pred_check
      _
    $region55: #{tpu_custom_call.1} parent=1 // pred_check_branch
      %482 = sbr.rel (0) target = $region57
    $region56: #{tpu_custom_call.1} parent=1 // pred_region
      %483 = dma.done [#allocation5], 128
    $region57: #{tpu_custom_call.1} parent=1 // pred_fallthru
      _
    %484 = vsyncpa [#allocation4], 1
    %485 = vsyncpa [#allocation7], 1
    %486 = vsyncpa [#allocation5], 1

// kernel: tpu_custom_call.1
$region0: #{tpu_custom_call.1}
  #allocation0 [shape = 'u32[]', space=smem, size = 0x4, offset = 0x4, fixed_abs, tag = 'smem constant byte address 0x4 - core index']
  #allocation1 [shape = 'u32[144,128]{1,0:T(1,128)}', space=vmem, size = 0x12000, scoped, tag = 'internal scratch']
  #allocation2 [shape = 'f32[8,256]{1,0:T(8,128)}', space=vmem, size = 0x2000, scoped, tag = 'scratch operand']
  %s0 = inlined_call_operand.hbm [shape: bf16[8,128], index: 0, kind: input, shape index: {}]
  %s1 = inlined_call_operand.hbm [shape: bf16[128,256], index: 1, kind: input, shape index: {}]
  %s2 = inlined_call_operand.vmem [shape: f32[1,256], index: 2, kind: input, shape index: {}]
  %s3 = inlined_call_operand.vmem [shape: f32[1,256], index: 3, kind: input, shape index: {}]
  %s4 = inlined_call_operand.vmem [shape: f32[1,256], index: 4, kind: input, shape index: {}]
  %s5 = inlined_call_operand.hbm [shape: bf16[256,128], index: 5, kind: input, shape index: {}]
  %s6 = inlined_call_operand.vmem [shape: f32[1,128], index: 6, kind: input, shape index: {}]
  %s7 = inlined_call_operand.hbm [shape: f32[8,128], index: 7, kind: output, shape index: {}]
  %s8 = sld [smem:[#allocation0]]
  $region58: #{tpu_custom_call.1} parent=0
    _
  %s10 = ssub.s32 1, %s8
  %s11 = scalar_select 0, %s10, %s8
  $region1: #{tpu_custom_call.1} parent=0
    #allocation3 [shape = 'u8[2048]{0}', space=vmem, size = 0x800, scoped, tag = 'input window, operand 0, single buffered']
    #allocation4 [shape = 's32[1]{0}', space=sflag, size = 0x4, scoped, tag = 'scoped memory for tpu_custom_call.1']
    #allocation5 [shape = 's32[1]{0}', space=sflag, size = 0x4, scoped, tag = 'scoped memory for tpu_custom_call.1']
    #allocation6 [shape = 'u8[65536]{0}', space=vmem, size = 0x10000, scoped, tag = 'input window, operand 1, single buffered']
    #allocation7 [shape = 's32[1]{0}', space=sflag, size = 0x4, scoped, tag = 'scoped memory for tpu_custom_call.1']
    #allocation8 [shape = 'u8[65536]{0}', space=vmem, size = 0x10000, scoped, tag = 'input window, operand 5, single buffered']
    #allocation9 [shape = 'u8[4096]{0}', space=vmem, size = 0x1000, scoped, tag = 'output window, operand 0, single buffered']
    %12 = vsyncpa [#allocation4], 0
    %13 = vsyncpa [#allocation7], 0
    %14 = vsyncpa [#allocation5], 0
    // Predicated region
    $region2: #{tpu_custom_call.1} parent=1 // pred_check
      _
    $region3: #{tpu_custom_call.1} parent=1 // pred_check_branch
      %16 = sbr.rel (0) target = $region5
    $region4: #{tpu_custom_call.1} parent=1 // pred_region
      %s18 = ssub.s32 64, 64
      %19 = vsyncadd [#allocation4], %s18
      %s21 = sshll.u32 [#allocation3], 4
      %s22 = int_to_ptr.vmem [resolvable:$true] %s21
      %24 = dma.hbm_to_vmem [thread:$0]  %s0, 64, %s22, [#allocation4]
    $region5: #{tpu_custom_call.1} parent=1 // pred_fallthru
      _
    // Predicated region
    $region6: #{tpu_custom_call.1} parent=1 // pred_check
      _
    $region7: #{tpu_custom_call.1} parent=1 // pred_check_branch
      %26 = sbr.rel (0) target = $region9
    $region8: #{tpu_custom_call.1} parent=1 // pred_region
      %s28 = ssub.s32 2048, 2048
      %29 = vsyncadd [#allocation7], %s28
      %s30 = sshll.u32 [#allocation6], 4
      %s31 = int_to_ptr.vmem [resolvable:$true] %s30
      %36 = dma.hbm_to_vmem [thread:$0]  %s1, 2048, %s31, [#allocation7], 128, 128, 8
    $region9: #{tpu_custom_call.1} parent=1 // pred_fallthru
      _
    // Predicated region
    $region10: #{tpu_custom_call.1} parent=1 // pred_check
      _
    $region11: #{tpu_custom_call.1} parent=1 // pred_check_branch
      %38 = sbr.rel (0) target = $region13
    $region12: #{tpu_custom_call.1} parent=1 // pred_region
      _
    $region13: #{tpu_custom_call.1} parent=1 // pred_fallthru
      _
    // Predicated region
    $region14: #{tpu_custom_call.1} parent=1 // pred_check
      _
    $region15: #{tpu_custom_call.1} parent=1 // pred_check_branch
      %40 = sbr.rel (0) target = $region17
    $region16: #{tpu_custom_call.1} parent=1 // pred_region
      _
    $region17: #{tpu_custom_call.1} parent=1 // pred_fallthru
      _
    // Predicated region
    $region18: #{tpu_custom_call.1} parent=1 // pred_check
      _
    $region19: #{tpu_custom_call.1} parent=1 // pred_check_branch
      %42 = sbr.rel (0) target = $region21
    $region20: #{tpu_custom_call.1} parent=1 // pred_region
      _
    $region21: #{tpu_custom_call.1} parent=1 // pred_fallthru
      _
    // Predicated region
    $region22: #{tpu_custom_call.1} parent=1 // pred_check
      _
    $region23: #{tpu_custom_call.1} parent=1 // pred_check_branch
      %44 = sbr.rel (0) target = $region25
    $region24: #{tpu_custom_call.1} parent=1 // pred_region
      %s46 = ssub.s32 2048, 2048
      %47 = vsyncadd [#allocation7], %s46
      %s48 = sshll.u32 [#allocation8], 4
      %s49 = int_to_ptr.vmem [resolvable:$true] %s48
      %54 = dma.hbm_to_vmem [thread:$0]  %s5, 2048, %s49, [#allocation7], 64, 64, 4
    $region25: #{tpu_custom_call.1} parent=1 // pred_fallthru
      _
    // Predicated region
    $region26: #{tpu_custom_call.1} parent=1 // pred_check
      _
    $region27: #{tpu_custom_call.1} parent=1 // pred_check_branch
      %56 = sbr.rel (0) target = $region29
    $region28: #{tpu_custom_call.1} parent=1 // pred_region
      _
    $region29: #{tpu_custom_call.1} parent=1 // pred_fallthru
      _
    // Predicated region
    $region30: #{tpu_custom_call.1} parent=1 // pred_check
      _
    $region31: #{tpu_custom_call.1} parent=1 // pred_check_branch
      %58 = sbr.rel (0) target = $region33
    $region32: #{tpu_custom_call.1} parent=1 // pred_region
      %59 = dma.done [#allocation4], 64
    $region33: #{tpu_custom_call.1} parent=1 // pred_fallthru
      _
    // Predicated region
    $region34: #{tpu_custom_call.1} parent=1 // pred_check
      _
    $region35: #{tpu_custom_call.1} parent=1 // pred_check_branch
      %61 = sbr.rel (0) target = $region37
    $region36: #{tpu_custom_call.1} parent=1 // pred_region
      %62 = dma.done [#allocation7], 2048
    $region37: #{tpu_custom_call.1} parent=1 // pred_fallthru
      _
    // Predicated region
    $region38: #{tpu_custom_call.1} parent=1 // pred_check
      _
    $region39: #{tpu_custom_call.1} parent=1 // pred_check_branch
      %64 = sbr.rel (0) target = $region41
    $region40: #{tpu_custom_call.1} parent=1 // pred_region
      %65 = dma.done [#allocation7], 2048
    $region41: #{tpu_custom_call.1} parent=1 // pred_fallthru
      _
    %p67 = scmp.eq.s32.totalorder 0, 0
    // Predicated region
    $region42: #{tpu_custom_call.1} parent=1 // pred_check
      %p68 = pneg %p67
    $region43: #{tpu_custom_call.1} parent=1 // pred_check_branch
      %70 = sbr.rel (%p68) target = $region45
    $region44: #{tpu_custom_call.1} parent=1 // pred_region
      %71 = vst [vmem:[#allocation2] sm:$0xff] 0.0
      %72 = vst [vmem:[#allocation2 + $0x8] sm:$0xff] 0.0
    $region45: #{tpu_custom_call.1} parent=1 // pred_fallthru
      _
    %v73 = vld [vmem:[#allocation2] sm:$0xff]
    %v74 = vld [vmem:[#allocation2 + $0x8] sm:$0xff]
    %v75 = vld [vmem:[#allocation3] sm:$0xf]
    %v76 = vld [vmem:[#allocation6] sm:$0xff]
    %v77 = vld [vmem:[#allocation6 + $0x8] sm:$0xff]
    %v78 = vld [vmem:[#allocation6 + $0x10] sm:$0xff]
    %v79 = vld [vmem:[#allocation6 + $0x18] sm:$0xff]
    %v80 = vld [vmem:[#allocation6 + $0x20] sm:$0xff]
    %v81 = vld [vmem:[#allocation6 + $0x28] sm:$0xff]
    %v82 = vld [vmem:[#allocation6 + $0x30] sm:$0xff]
    %v83 = vld [vmem:[#allocation6 + $0x38] sm:$0xff]
    %v84 = vld [vmem:[#allocation6 + $0x40] sm:$0xff]
    %v85 = vld [vmem:[#allocation6 + $0x48] sm:$0xff]
    %v86 = vld [vmem:[#allocation6 + $0x50] sm:$0xff]
    %v87 = vld [vmem:[#allocation6 + $0x58] sm:$0xff]
    %v88 = vld [vmem:[#allocation6 + $0x60] sm:$0xff]
    %v89 = vld [vmem:[#allocation6 + $0x68] sm:$0xff]
    %v90 = vld [vmem:[#allocation6 + $0x70] sm:$0xff]
    %v91 = vld [vmem:[#allocation6 + $0x78] sm:$0xff]
    %v108 = vunpack.c.l.b16 %v76
    %v109 = vunpack.c.h.b16 %v76
    %v110 = vunpack.c.l.b16 %v77
    %v111 = vunpack.c.h.b16 %v77
    %v112 = vunpack.c.l.b16 %v78
    %v113 = vunpack.c.h.b16 %v78
    %v114 = vunpack.c.l.b16 %v79
    %v115 = vunpack.c.h.b16 %v79
    %v116 = vunpack.c.l.b16 %v80
    %v117 = vunpack.c.h.b16 %v80
    %v118 = vunpack.c.l.b16 %v81
    %v119 = vunpack.c.h.b16 %v81
    %v120 = vunpack.c.l.b16 %v82
    %v121 = vunpack.c.h.b16 %v82
    %v122 = vunpack.c.l.b16 %v83
    %v123 = vunpack.c.h.b16 %v83
    %v124 = vunpack.c.l.b16 %v84
    %v125 = vunpack.c.h.b16 %v84
    %v126 = vunpack.c.l.b16 %v85
    %v127 = vunpack.c.h.b16 %v85
    %v128 = vunpack.c.l.b16 %v86
    %v129 = vunpack.c.h.b16 %v86
    %v130 = vunpack.c.l.b16 %v87
    %v131 = vunpack.c.h.b16 %v87
    %v132 = vunpack.c.l.b16 %v88
    %v133 = vunpack.c.h.b16 %v88
    %v134 = vunpack.c.l.b16 %v89
    %v135 = vunpack.c.h.b16 %v89
    %v136 = vunpack.c.l.b16 %v90
    %v137 = vunpack.c.h.b16 %v90
    %v138 = vunpack.c.l.b16 %v91
    %v139 = vunpack.c.h.b16 %v91
    %v140 = vpack.c.b16 %v110, %v108
    %v141 = vpack.c.b16 %v111, %v109
    %v142 = vpack.c.b16 %v114, %v112
    %v143 = vpack.c.b16 %v115, %v113
    %v144 = vpack.c.b16 %v118, %v116
    %v145 = vpack.c.b16 %v119, %v117
    %v146 = vpack.c.b16 %v122, %v120
    %v147 = vpack.c.b16 %v123, %v121
    %v148 = vpack.c.b16 %v126, %v124
    %v149 = vpack.c.b16 %v127, %v125
    %v150 = vpack.c.b16 %v130, %v128
    %v151 = vpack.c.b16 %v131, %v129
    %v152 = vpack.c.b16 %v134, %v132
    %v153 = vpack.c.b16 %v135, %v133
    %v154 = vpack.c.b16 %v138, %v136
    %v155 = vpack.c.b16 %v139, %v137
    %172 = vmatprep.subr.bf16.mxu0 %v141
    %173 = vmatpush1.bf16.msra.mxu0 %v140
    %174 = vmatprep.subr.bf16.mxu0 %v143
    %175 = vmatpush1.bf16.msra.mxu0 %v142
    %176 = vmatprep.subr.bf16.mxu0 %v145
    %177 = vmatpush1.bf16.msra.mxu0 %v144
    %178 = vmatprep.subr.bf16.mxu0 %v147
    %179 = vmatpush1.bf16.msra.mxu0 %v146
    %180 = vmatprep.subr.bf16.mxu0 %v149
    %181 = vmatpush1.bf16.msra.mxu0 %v148
    %182 = vmatprep.subr.bf16.mxu0 %v151
    %183 = vmatpush1.bf16.msra.mxu0 %v150
    %184 = vmatprep.subr.bf16.mxu0 %v153
    %185 = vmatpush1.bf16.msra.mxu0 %v152
    %186 = vmatprep.subr.bf16.mxu0 %v155
    %187 = vmatpush1.bf16.msra.mxu0 %v154
    %188 = vmatprep.subr.bf16.mxu0 0
    %189 = vmatpush1.bf16.msra.mxu0 0
    %190 = vmatprep.subr.bf16.mxu0 0
    %191 = vmatpush1.bf16.msra.mxu0 0
    %192 = vmatprep.subr.bf16.mxu0 0
    %193 = vmatpush1.bf16.msra.mxu0 0
    %194 = vmatprep.subr.bf16.mxu0 0
    %195 = vmatpush1.bf16.msra.mxu0 0
    %196 = vmatprep.subr.bf16.mxu0 0
    %197 = vmatpush1.bf16.msra.mxu0 0
    %198 = vmatprep.subr.bf16.mxu0 0
    %199 = vmatpush1.bf16.msra.mxu0 0
    %200 = vmatprep.subr.bf16.mxu0 0
    %201 = vmatpush1.bf16.msra.mxu0 0
    %202 = vmatprep.subr.bf16.mxu0 0
    %203 = vmatpush1.bf16.msra.mxu0 0
    %204 = vmatprep.mubr.bf16.mxu0 0
    %205 = vmatmul.mubr.bf16.gmra.mrb[0].mxu0 %v75
    %v206 = vpop.f32.mrb[0].mxu0
    %v207 = vadd.f32 0.0, %v206
    %v208 = vpop.f32.mrb[0].mxu0
    %v209 = vadd.f32 0.0, %v208
    %v210 = vpop.f32.mrb[0].mxu0
    %v211 = vpop.f32.mrb[0].mxu0
    %212 = vdwg.mxu0
    %v213 = vadd.f32 %v73, %v207
    %v214 = vadd.f32 %v74, %v209
    %215 = vst [vmem:[#allocation2] sm:$0xff] %v213
    %216 = vst [vmem:[#allocation2 + $0x8] sm:$0xff] %v214
    // Predicated region
    $region46: #{tpu_custom_call.1} parent=1 // pred_check
      %p217 = pneg %p67
    $region47: #{tpu_custom_call.1} parent=1 // pred_check_branch
      %219 = sbr.rel (%p217) target = $region49
    $region48: #{tpu_custom_call.1} parent=1 // pred_region
      %v220 = vld [vmem:[#allocation2] sm:$0xff]
      %v221 = vld [vmem:[#allocation2 + $0x8] sm:$0xff]
      %v222 = vld [vmem:[%s2] sm:$0x3]
      %v224 = vlaneseq
      %v225 = vshrl.u32 %v224, 7
      %v226 = vsub.s32 0, %v225
      %v227 = vrot.slane %v222, %v226
      %v228 = vlaneseq
      %v229 = vshrl.u32 %v228, 7
      %v230 = vsub.s32 1, %v229
      %v231 = vrot.slane %v222, %v230
      %v234 = vadd.f32 %v220, %v227
      %v235 = vadd.f32 %v221, %v231
      %v236 = vadd.f32 %v234, %v235
      %237 = vadd.xlane.f32.xlu0 %v236
      %v238 = vpop.xlane.xlu0 %237
      %v239 = vmul.f32 %v234, %v234
      %v240 = vmul.f32 %v235, %v235
      %v241 = vadd.f32 %v239, %v240
      %242 = vadd.xlane.f32.xlu0 %v241
      %v243 = vpop.xlane.xlu0 %242
      %v244 = vmul.f32 %v238, 0.00390625
      %v245 = vmul.f32 %v243, 0.00390625
      %v246 = vmul.f32 %v244, %v244
      %v247 = vsub.f32 %v245, %v246
      %v248 = vmax.f32 %v247, 0.0
      %v249 = vsub.f32 %v234, %v244
      %v250 = vsub.f32 %v235, %v244
      %v251 = vadd.f32 %v248, 1e-05
      %v252 = vrsqrt.pop %v251
      %v253 = vmul.f32 %v249, %v252
      %v254 = vmul.f32 %v250, %v252
      %v255 = vld [vmem:[%s3] sm:$0x3]
      %v257 = vlaneseq
      %v258 = vshrl.u32 %v257, 7
      %v259 = vsub.s32 0, %v258
      %v260 = vrot.slane %v255, %v259
      %v261 = vlaneseq
      %v262 = vshrl.u32 %v261, 7
      %v263 = vsub.s32 1, %v262
      %v264 = vrot.slane %v255, %v263
      %v267 = vmul.f32 %v253, %v260
      %v268 = vmul.f32 %v254, %v264
      %v269 = vld [vmem:[%s4] sm:$0x3]
      %v271 = vlaneseq
      %v272 = vshrl.u32 %v271, 7
      %v273 = vsub.s32 0, %v272
      %v274 = vrot.slane %v269, %v273
      %v275 = vlaneseq
      %v276 = vshrl.u32 %v275, 7
      %v277 = vsub.s32 1, %v276
      %v278 = vrot.slane %v269, %v277
      %v281 = vadd.f32 %v267, %v274
      %v282 = vadd.f32 %v268, %v278
      %v283 = vmul.f32 %v281, 0.5
      %v284 = vmul.f32 %v282, 0.5
      %v285 = vmul.f32 %v281, 0.70710677
      %v286 = vmul.f32 %v282, 0.70710677
      %v287 = verf.f32.pop %v285
      %v288 = verf.f32.pop %v286
      %v289 = vadd.f32 %v287, 1.0
      %v290 = vadd.f32 %v288, 1.0
      %v291 = vmul.f32 %v283, %v289
      %v292 = vmul.f32 %v284, %v290
      %v293 = vpack.c.bf16 %v291, %v291
      %v294 = vpack.c.bf16 %v292, %v292
      %v295 = vld [vmem:[#allocation8] sm:$0xf]
      %v296 = vld [vmem:[#allocation8 + $0x4] sm:$0xf]
      %v297 = vld [vmem:[#allocation8 + $0x8] sm:$0xf]
      %v298 = vld [vmem:[#allocation8 + $0xc] sm:$0xf]
      %v299 = vld [vmem:[#allocation8 + $0x10] sm:$0xf]
      %v300 = vld [vmem:[#allocation8 + $0x14] sm:$0xf]
      %v301 = vld [vmem:[#allocation8 + $0x18] sm:$0xf]
      %v302 = vld [vmem:[#allocation8 + $0x1c] sm:$0xf]
      %v303 = vld [vmem:[#allocation8 + $0x20] sm:$0xf]
      %v304 = vld [vmem:[#allocation8 + $0x24] sm:$0xf]
      %v305 = vld [vmem:[#allocation8 + $0x28] sm:$0xf]
      %v306 = vld [vmem:[#allocation8 + $0x2c] sm:$0xf]
      %v307 = vld [vmem:[#allocation8 + $0x30] sm:$0xf]
      %v308 = vld [vmem:[#allocation8 + $0x34] sm:$0xf]
      %v309 = vld [vmem:[#allocation8 + $0x38] sm:$0xf]
      %v310 = vld [vmem:[#allocation8 + $0x3c] sm:$0xf]
      %v311 = vld [vmem:[#allocation8 + $0x40] sm:$0xf]
      %v312 = vld [vmem:[#allocation8 + $0x44] sm:$0xf]
      %v313 = vld [vmem:[#allocation8 + $0x48] sm:$0xf]
      %v314 = vld [vmem:[#allocation8 + $0x4c] sm:$0xf]
      %v315 = vld [vmem:[#allocation8 + $0x50] sm:$0xf]
      %v316 = vld [vmem:[#allocation8 + $0x54] sm:$0xf]
      %v317 = vld [vmem:[#allocation8 + $0x58] sm:$0xf]
      %v318 = vld [vmem:[#allocation8 + $0x5c] sm:$0xf]
      %v319 = vld [vmem:[#allocation8 + $0x60] sm:$0xf]
      %v320 = vld [vmem:[#allocation8 + $0x64] sm:$0xf]
      %v321 = vld [vmem:[#allocation8 + $0x68] sm:$0xf]
      %v322 = vld [vmem:[#allocation8 + $0x6c] sm:$0xf]
      %v323 = vld [vmem:[#allocation8 + $0x70] sm:$0xf]
      %v324 = vld [vmem:[#allocation8 + $0x74] sm:$0xf]
      %v325 = vld [vmem:[#allocation8 + $0x78] sm:$0xf]
      %v326 = vld [vmem:[#allocation8 + $0x7c] sm:$0xf]
      %v327 = vld [vmem:[%s6] sm:$0x1]
      %v329 = vlaneseq
      %v330 = vshrl.u32 %v329, 7
      %v331 = vsub.s32 0, %v330
      %v332 = vrot.slane %v327, %v331
      %v366 = vunpack.c.l.b16 %v295
      %v367 = vunpack.c.l.b16 %v296
      %v368 = vunpack.c.l.b16 %v297
      %v369 = vunpack.c.l.b16 %v298
      %v370 = vunpack.c.l.b16 %v299
      %v371 = vunpack.c.l.b16 %v300
      %v372 = vunpack.c.l.b16 %v301
      %v373 = vunpack.c.l.b16 %v302
      %v374 = vunpack.c.l.b16 %v303
      %v375 = vunpack.c.l.b16 %v304
      %v376 = vunpack.c.l.b16 %v305
      %v377 = vunpack.c.l.b16 %v306
      %v378 = vunpack.c.l.b16 %v307
      %v379 = vunpack.c.l.b16 %v308
      %v380 = vunpack.c.l.b16 %v309
      %v381 = vunpack.c.l.b16 %v310
      %v382 = vunpack.c.l.b16 %v311
      %v383 = vunpack.c.l.b16 %v312
      %v384 = vunpack.c.l.b16 %v313
      %v385 = vunpack.c.l.b16 %v314
      %v386 = vunpack.c.l.b16 %v315
      %v387 = vunpack.c.l.b16 %v316
      %v388 = vunpack.c.l.b16 %v317
      %v389 = vunpack.c.l.b16 %v318
      %v390 = vunpack.c.l.b16 %v319
      %v391 = vunpack.c.l.b16 %v320
      %v392 = vunpack.c.l.b16 %v321
      %v393 = vunpack.c.l.b16 %v322
      %v394 = vunpack.c.l.b16 %v323
      %v395 = vunpack.c.l.b16 %v324
      %v396 = vunpack.c.l.b16 %v325
      %v397 = vunpack.c.l.b16 %v326
      %v398 = vpack.c.b16 %v367, %v366
      %v399 = vpack.c.b16 %v369, %v368
      %v400 = vpack.c.b16 %v371, %v370
      %v401 = vpack.c.b16 %v373, %v372
      %v402 = vpack.c.b16 %v375, %v374
      %v403 = vpack.c.b16 %v377, %v376
      %v404 = vpack.c.b16 %v379, %v378
      %v405 = vpack.c.b16 %v381, %v380
      %v406 = vpack.c.b16 %v383, %v382
      %v407 = vpack.c.b16 %v385, %v384
      %v408 = vpack.c.b16 %v387, %v386
      %v409 = vpack.c.b16 %v389, %v388
      %v410 = vpack.c.b16 %v391, %v390
      %v411 = vpack.c.b16 %v393, %v392
      %v412 = vpack.c.b16 %v395, %v394
      %v413 = vpack.c.b16 %v397, %v396
      %430 = vmatprep.subr.bf16.mxu0 0
      %431 = vmatpush1.bf16.msra.mxu0 %v398
      %432 = vmatprep.subr.bf16.mxu0 0
      %433 = vmatpush1.bf16.msra.mxu0 %v399
      %434 = vmatprep.subr.bf16.mxu0 0
      %435 = vmatpush1.bf16.msra.mxu0 %v400
      %436 = vmatprep.subr.bf16.mxu0 0
      %437 = vmatpush1.bf16.msra.mxu0 %v401
      %438 = vmatprep.subr.bf16.mxu0 0
      %439 = vmatpush1.bf16.msra.mxu0 %v402
      %440 = vmatprep.subr.bf16.mxu0 0
      %441 = vmatpush1.bf16.msra.mxu0 %v403
      %442 = vmatprep.subr.bf16.mxu0 0
      %443 = vmatpush1.bf16.msra.mxu0 %v404
      %444 = vmatprep.subr.bf16.mxu0 0
      %445 = vmatpush1.bf16.msra.mxu0 %v405
      %446 = vmatprep.subr.bf16.mxu0 0
      %447 = vmatpush1.bf16.msra.mxu0 %v406
      %448 = vmatprep.subr.bf16.mxu0 0
      %449 = vmatpush1.bf16.msra.mxu0 %v407
      %450 = vmatprep.subr.bf16.mxu0 0
      %451 = vmatpush1.bf16.msra.mxu0 %v408
      %452 = vmatprep.subr.bf16.mxu0 0
      %453 = vmatpush1.bf16.msra.mxu0 %v409
      %454 = vmatprep.subr.bf16.mxu0 0
      %455 = vmatpush1.bf16.msra.mxu0 %v410
      %456 = vmatprep.subr.bf16.mxu0 0
      %457 = vmatpush1.bf16.msra.mxu0 %v411
      %458 = vmatprep.subr.bf16.mxu0 0
      %459 = vmatpush1.bf16.msra.mxu0 %v412
      %460 = vmatprep.subr.bf16.mxu0 0
      %461 = vmatpush1.bf16.msra.mxu0 %v413
      %462 = vmatprep.mubr.bf16.mxu0 %v294
      %463 = vmatmul.mubr.bf16.gmra.mrb[0].mxu0 %v293
      %v464 = vpop.f32.mrb[0].mxu0
      %v465 = vadd.f32 %v332, %v464
      %v466 = vpop.f32.mrb[0].mxu0
      %v467 = vpop.f32.mrb[0].mxu0
      %v468 = vpop.f32.mrb[0].mxu0
      %469 = vdwg.mxu0
      %470 = vst [vmem:[#allocation9] sm:$0xff] %v465
    $region49: #{tpu_custom_call.1} parent=1 // pred_fallthru
      _
    // Predicated region
    $region50: #{tpu_custom_call.1} parent=1 // pred_check
      _
    $region51: #{tpu_custom_call.1} parent=1 // pred_check_branch
      %472 = sbr.rel (0) target = $region53
    $region52: #{tpu_custom_call.1} parent=1 // pred_region
      %s474 = ssub.s32 128, 128
      %475 = vsyncadd [#allocation5], %s474
      %s477 = sshll.u32 [#allocation9], 4
      %s478 = int_to_ptr.vmem [resolvable:$true] %s477
      %480 = dma.vmem_to_hbm [thread:$0]  %s478, 128, %s7, [#allocation5]
    $region53: #{tpu_custom_call.1} parent=1 // pred_fallthru
      _
    // Predicated region
    $region54: #{tpu_custom_call.1} parent=1 // pred_check
      _
    $region55: #{tpu_custom_call.1} parent=1 // pred_check_branch
      %482 = sbr.rel (0) target = $region57
    $region56: #{tpu_custom_call.1} parent=1 // pred_region
      %483 = dma.done [#allocation5], 128
    $region57: #{tpu_custom_call.1} parent=1 // pred_fallthru
      _
    %484 = vsyncpa [#allocation4], 1
    %485 = vsyncpa [#allocation7], 1
    %486 = vsyncpa [#allocation5], 1

</llo_original>
